<compile_context>
chip_gen: v6e
topology: v6e:2x2x1
jax: 0.10.0
libtpu: 0.0.40
codegen_flags: <defaults>
</compile_context>

<pallas_src>
import jax
import jax.numpy as jnp
from jax.experimental import pallas as pl
from jax.experimental.pallas import tpu as pltpu

BN_EPS = 1e-5

IN_DIM = 100          # true input feature count (kept un-padded in HBM)
H1, H2, H3 = 256, 128, 64
OUT_DIM = 5           # true output class count
OUT_PAD = 128         # lane-dense (unmasked-store) output width; sliced to 5 in wrapper
MAX_TILE_B = 512      # batch-tile cap (512-row tiles sit near HBM roofline)


def _round_up(n, m):
    return ((n + m - 1) // m) * m


def _tile_plan(batch):
    """Return (tile_b, n_tiles).

    - batch <= 8: one 8-row tile (latency regime, single launch).
    - batch  > 8: at least 2 tiles (v7x megacore), tile_b <= MAX_TILE_B,
      tile_b chosen to divide the batch as tightly as possible (minimal dead rows).
    """
    if batch <= 8:
        return _round_up(max(batch, 1), 8), 1
    n_tiles = max(2, pl.cdiv(batch, MAX_TILE_B))
    tile_b = _round_up(pl.cdiv(batch, n_tiles), 8)
    n_tiles = pl.cdiv(batch, tile_b)
    return tile_b, n_tiles


def _mlp_kernel(x_ref,
                w1_ref, b1_ref,
                w2_ref, b2_ref,
                w3_ref, b3_ref,
                w4_ref, b4_ref,
                o_ref):
    """Fused (Linear+bias+ReLU) x3 -> Linear for one batch tile.

    x arrives as raw f32 (tile_b, 100); the bf16 cast (and implicit lane pad to
    the layout) happens here instead of as a separate HBM pass. Weights are bf16,
    biases f32, all matmuls accumulate in f32 on the MXU. Output stored as bf16.
    """
    h = x_ref[...].astype(jnp.bfloat16)                               # (tb, 100)
    h = jnp.dot(h, w1_ref[...], preferred_element_type=jnp.float32) + b1_ref[...]
    h = jnp.maximum(h, 0.0).astype(jnp.bfloat16)                      # (tb, 256)
    h = jnp.dot(h, w2_ref[...], preferred_element_type=jnp.float32) + b2_ref[...]
    h = jnp.maximum(h, 0.0).astype(jnp.bfloat16)                      # (tb, 128)
    h = jnp.dot(h, w3_ref[...], preferred_element_type=jnp.float32) + b3_ref[...]
    h = jnp.maximum(h, 0.0).astype(jnp.bfloat16)                      # (tb, 64)
    out = jnp.dot(h, w4_ref[...], preferred_element_type=jnp.float32) + b4_ref[...]
    o_ref[...] = out.astype(o_ref.dtype)                              # bf16, 128 lanes


def fold_and_pad_params(params):
    """Fold eval-mode BatchNorm into the preceding Linear; pad only the final output.

    Returns (weights_bf16, biases_f32) ready for the kernel:
      weights: w1 (100,256), w2 (256,128), w3 (128,64), w4 (64,128)   [bf16]
      biases : b1 (1,256),   b2 (1,128),   b3 (1,64),   b4 (1,128)    [f32]
    NOTE: valid for inference only; re-derive if running stats change.
    """
    (w1, b1, g1, be1, rm1, rv1,
     w2, b2, g2, be2, rm2, rv2,
     w3, b3, g3, be3, rm3, rv3,
     w4, b4) = params

    def fold(w, b, g, be, rm, rv):
        scale = g * jax.lax.rsqrt(rv + BN_EPS)          # (1, out)
        return w * scale, (b - rm) * scale + be

    w1f, b1f = fold(w1, b1, g1, be1, rm1, rv1)
    w2f, b2f = fold(w2, b2, g2, be2, rm2, rv2)
    w3f, b3f = fold(w3, b3, g3, be3, rm3, rv3)

    # Pad final output 5 -> 128 lanes (unmasked full-lane stores in the kernel).
    w4p = jnp.pad(w4, ((0, 0), (0, OUT_PAD - OUT_DIM)))
    b4p = jnp.pad(b4, ((0, 0), (0, OUT_PAD - OUT_DIM)))

    weights = tuple(w.astype(jnp.bfloat16) for w in (w1f, w2f, w3f, w4p))
    biases = tuple(b.astype(jnp.float32) for b in (b1f, b2f, b3f, b4p))
    return weights, biases


@jax.jit
def classifier_forward(x, weights, biases):
    """x: (batch, 100) f32.  weights/biases: output of fold_and_pad_params."""
    batch = x.shape[0]
    tile_b, n_tiles = _tile_plan(batch)
    padded_batch = tile_b * n_tiles

    # Only the batch dimension is (minimally) padded, and only when needed;
    # no feature pad / dtype cast pass over x in the wrapper.
    if padded_batch != batch:
        x = jnp.pad(x, ((0, padded_batch - batch), (0, 0)))

    w1, w2, w3, w4 = weights
    b1, b2, b3, b4 = biases

    def resident(arr):
        # Full-array block, same block index every grid step -> stays in VMEM.
        return pl.BlockSpec(arr.shape, lambda i: (0, 0))

    in_specs = [
        pl.BlockSpec((tile_b, IN_DIM), lambda i: (i, 0)),   # x: batch-tiled, raw f32
        resident(w1), resident(b1),
        resident(w2), resident(b2),
        resident(w3), resident(b3),
        resident(w4), resident(b4),
    ]
    out_spec = pl.BlockSpec((tile_b, OUT_PAD), lambda i: (i, 0))

    flops = 2 * padded_batch * (IN_DIM * H1 + H1 * H2 + H2 * H3 + H3 * OUT_PAD)
    bytes_accessed = (
        padded_batch * IN_DIM * 4                      # f32 input read
        + sum(int(w.size) * 2 for w in weights)        # bf16 weights
        + sum(int(b.size) * 4 for b in biases)         # f32 biases
        + padded_batch * OUT_PAD * 2                   # bf16 output write
    )

    out = pl.pallas_call(
        _mlp_kernel,
        out_shape=jax.ShapeDtypeStruct((padded_batch, OUT_PAD), jnp.bfloat16),
        grid=(n_tiles,),
        in_specs=in_specs,
        out_specs=out_spec,
        compiler_params=pltpu.CompilerParams(
            dimension_semantics=("parallel",),   # shards batch tiles across TCs on v7x
        ),
        cost_estimate=pl.CostEstimate(
            flops=flops, transcendentals=0, bytes_accessed=bytes_accessed),
    )(x, w1, b1, w2, b2, w3, b3, w4, b4)

    # bf16 logit rounding (~0.4% rel.) is negligible for classification; cast back
    # to f32 and slice off lane/batch padding here.
    return out[:batch, :OUT_DIM].astype(jnp.float32)


def make_params(key):
    """Deterministic synthetic parameter init (shapes from Classifier.__init__)."""
    dims = [(IN_DIM, H1), (H1, H2), (H2, H3), (H3, OUT_DIM)]
    params = []
    for li, (fan_in, fan_out) in enumerate(dims):
        key, kw, kb, kg, kbe, km, kv = jax.random.split(key, 7)
        w = jax.random.normal(kw, (fan_in, fan_out), jnp.float32) * 0.05
        b = jax.random.normal(kb, (1, fan_out), jnp.float32) * 0.05
        params.extend([w, b])
        if li < 3:  # BatchNorm1d follows the first three Linear layers only
            gamma = 1.0 + 0.1 * jax.random.normal(kg, (1, fan_out), jnp.float32)
            beta = 0.1 * jax.random.normal(kbe, (1, fan_out), jnp.float32)
            run_mean = 0.1 * jax.random.normal(km, (1, fan_out), jnp.float32)
            run_var = jax.random.uniform(
                kv, (1, fan_out), jnp.float32, minval=0.5, maxval=1.5
            )
            params.extend([gamma, beta, run_mean, run_var])
    return tuple(params)


def reference_forward(x, params):
    """Plain-JAX f32 reference (un-folded, un-padded) for a sanity check."""
    (w1, b1, g1, be1, rm1, rv1,
     w2, b2, g2, be2, rm2, rv2,
     w3, b3, g3, be3, rm3, rv3,
     w4, b4) = params

    def block(h, w, b, g, be, rm, rv):
        h = h @ w + b
        h = (h - rm) / jnp.sqrt(rv + BN_EPS) * g + be
        return jnp.maximum(h, 0.0)

    h = block(x, w1, b1, g1, be1, rm1, rv1)
    h = block(h, w2, b2, g2, be2, rm2, rv2)
    h = block(h, w3, b3, g3, be3, rm3, rv3)
    return h @ w4 + b4


# TODO(synk): train-mode dropout (RNG masking) and BatchNorm batch-statistics
# updates are intentionally not emulated; this kernel implements eval() semantics.

if __name__ == "__main__":
    key = jax.random.PRNGKey(0)
    key_x, key_p = jax.random.split(key)

    batch = 8
    x = jax.random.normal(key_x, (batch, IN_DIM), jnp.float32)
    params = make_params(key_p)

    weights, biases = fold_and_pad_params(params)
    out = classifier_forward(x, weights, biases)
    out = jax.block_until_ready(out)

    assert out.shape == (batch, OUT_DIM), out.shape
    ref = reference_forward(x, params)
    max_err = float(jnp.max(jnp.abs(out - ref)))
    assert jnp.allclose(out, ref, atol=5e-2, rtol=5e-2), max_err

    print("KERNEL_OK")
</pallas_src>

<mosaic_0001>
module attributes {stable_mosaic.version = 11 : i64} {
  func.func @_mlp_kernel(%arg0: i32, %arg1: memref<8x100xf32, #tpu.memory_space<vmem>>, %arg2: memref<100x256xbf16, #tpu.memory_space<vmem>>, %arg3: memref<1x256xf32, #tpu.memory_space<vmem>>, %arg4: memref<256x128xbf16, #tpu.memory_space<vmem>>, %arg5: memref<1x128xf32, #tpu.memory_space<vmem>>, %arg6: memref<128x64xbf16, #tpu.memory_space<vmem>>, %arg7: memref<1x64xf32, #tpu.memory_space<vmem>>, %arg8: memref<64x128xbf16, #tpu.memory_space<vmem>>, %arg9: memref<1x128xf32, #tpu.memory_space<vmem>>, %arg10: memref<8x128xbf16, #tpu.memory_space<vmem>>) attributes {dimension_semantics = [#tpu.dimension_semantics<parallel>], iteration_bounds = array<i64: 1>, scalar_prefetch = 0 : i64, scratch_operands = 0 : i64, tpu.core_type = #tpu.core_type<tc>, window_params = [{transform_indices = @transform_0, window_bounds = array<i64: 8, 100>}, {pipeline_mode = #tpu.pipeline_mode<synchronous>, transform_indices = @transform_1, window_bounds = array<i64: 100, 256>}, {pipeline_mode = #tpu.pipeline_mode<synchronous>, transform_indices = @transform_2, window_bounds = array<i64: 1, 256>}, {pipeline_mode = #tpu.pipeline_mode<synchronous>, transform_indices = @transform_3, window_bounds = array<i64: 256, 128>}, {pipeline_mode = #tpu.pipeline_mode<synchronous>, transform_indices = @transform_4, window_bounds = array<i64: 1, 128>}, {pipeline_mode = #tpu.pipeline_mode<synchronous>, transform_indices = @transform_5, window_bounds = array<i64: 128, 64>}, {pipeline_mode = #tpu.pipeline_mode<synchronous>, transform_indices = @transform_6, window_bounds = array<i64: 1, 64>}, {pipeline_mode = #tpu.pipeline_mode<synchronous>, transform_indices = @transform_7, window_bounds = array<i64: 64, 128>}, {pipeline_mode = #tpu.pipeline_mode<synchronous>, transform_indices = @transform_8, window_bounds = array<i64: 1, 128>}, {transform_indices = @transform_9, window_bounds = array<i64: 8, 128>}]} {
    %c0 = arith.constant 0 : index
    %c0_0 = arith.constant 0 : index
    %0 = vector.load %arg1[%c0, %c0_0] : memref<8x100xf32, #tpu.memory_space<vmem>>, vector<8x100xf32>
    %1 = arith.truncf %0 : vector<8x100xf32> to vector<8x100xbf16>
    %c0_1 = arith.constant 0 : index
    %c0_2 = arith.constant 0 : index
    %2 = vector.load %arg2[%c0_1, %c0_2] : memref<100x256xbf16, #tpu.memory_space<vmem>>, vector<100x256xbf16>
    %cst = arith.constant dense<0.000000e+00> : vector<8x256xf32>
    %3 = tpu.matmul %1, %2, %cst {dimension_numbers = #tpu.dot_dimension_numbers<[1], [0], [0], [1], [0, 0, 1, 1], [], []>} : vector<8x100xbf16>, vector<100x256xbf16>, vector<8x256xf32> -> vector<8x256xf32>
    %c0_3 = arith.constant 0 : index
    %c0_4 = arith.constant 0 : index
    %4 = vector.load %arg3[%c0_3, %c0_4] : memref<1x256xf32, #tpu.memory_space<vmem>>, vector<1x256xf32>
    %5 = vector.broadcast %4 : vector<1x256xf32> to vector<8x256xf32>
    %6 = arith.addf %3, %5 : vector<8x256xf32>
    %cst_5 = arith.constant 0.000000e+00 : f32
    %7 = vector.broadcast %cst_5 : f32 to vector<8x256xf32>
    %8 = arith.maximumf %6, %7 : vector<8x256xf32>
    %9 = arith.truncf %8 : vector<8x256xf32> to vector<8x256xbf16>
    %c0_6 = arith.constant 0 : index
    %c0_7 = arith.constant 0 : index
    %10 = vector.load %arg4[%c0_6, %c0_7] : memref<256x128xbf16, #tpu.memory_space<vmem>>, vector<256x128xbf16>
    %cst_8 = arith.constant dense<0.000000e+00> : vector<8x128xf32>
    %11 = tpu.matmul %9, %10, %cst_8 {dimension_numbers = #tpu.dot_dimension_numbers<[1], [0], [0], [1], [0, 0, 1, 1], [], []>} : vector<8x256xbf16>, vector<256x128xbf16>, vector<8x128xf32> -> vector<8x128xf32>
    %c0_9 = arith.constant 0 : index
    %c0_10 = arith.constant 0 : index
    %12 = vector.load %arg5[%c0_9, %c0_10] : memref<1x128xf32, #tpu.memory_space<vmem>>, vector<1x128xf32>
    %13 = vector.broadcast %12 : vector<1x128xf32> to vector<8x128xf32>
    %14 = arith.addf %11, %13 : vector<8x128xf32>
    %cst_11 = arith.constant 0.000000e+00 : f32
    %15 = vector.broadcast %cst_11 : f32 to vector<8x128xf32>
    %16 = arith.maximumf %14, %15 : vector<8x128xf32>
    %17 = arith.truncf %16 : vector<8x128xf32> to vector<8x128xbf16>
    %c0_12 = arith.constant 0 : index
    %c0_13 = arith.constant 0 : index
    %18 = vector.load %arg6[%c0_12, %c0_13] : memref<128x64xbf16, #tpu.memory_space<vmem>>, vector<128x64xbf16>
    %cst_14 = arith.constant dense<0.000000e+00> : vector<8x64xf32>
    %19 = tpu.matmul %17, %18, %cst_14 {dimension_numbers = #tpu.dot_dimension_numbers<[1], [0], [0], [1], [0, 0, 1, 1], [], []>} : vector<8x128xbf16>, vector<128x64xbf16>, vector<8x64xf32> -> vector<8x64xf32>
    %c0_15 = arith.constant 0 : index
    %c0_16 = arith.constant 0 : index
    %20 = vector.load %arg7[%c0_15, %c0_16] : memref<1x64xf32, #tpu.memory_space<vmem>>, vector<1x64xf32>
    %21 = vector.broadcast %20 : vector<1x64xf32> to vector<8x64xf32>
    %22 = arith.addf %19, %21 : vector<8x64xf32>
    %cst_17 = arith.constant 0.000000e+00 : f32
    %23 = vector.broadcast %cst_17 : f32 to vector<8x64xf32>
    %24 = arith.maximumf %22, %23 : vector<8x64xf32>
    %25 = arith.truncf %24 : vector<8x64xf32> to vector<8x64xbf16>
    %c0_18 = arith.constant 0 : index
    %c0_19 = arith.constant 0 : index
    %26 = vector.load %arg8[%c0_18, %c0_19] : memref<64x128xbf16, #tpu.memory_space<vmem>>, vector<64x128xbf16>
    %cst_20 = arith.constant dense<0.000000e+00> : vector<8x128xf32>
    %27 = tpu.matmul %25, %26, %cst_20 {dimension_numbers = #tpu.dot_dimension_numbers<[1], [0], [0], [1], [0, 0, 1, 1], [], []>} : vector<8x64xbf16>, vector<64x128xbf16>, vector<8x128xf32> -> vector<8x128xf32>
    %c0_21 = arith.constant 0 : index
    %c0_22 = arith.constant 0 : index
    %28 = vector.load %arg9[%c0_21, %c0_22] : memref<1x128xf32, #tpu.memory_space<vmem>>, vector<1x128xf32>
    %29 = vector.broadcast %28 : vector<1x128xf32> to vector<8x128xf32>
    %30 = arith.addf %27, %29 : vector<8x128xf32>
    %31 = arith.truncf %30 : vector<8x128xf32> to vector<8x128xbf16>
    %c0_23 = arith.constant 0 : index
    %c0_24 = arith.constant 0 : index
    %32 = vector.load %arg10[%c0_23, %c0_24] : memref<8x128xbf16, #tpu.memory_space<vmem>>, vector<8x128xbf16>
    tpu.vector_store %arg10[%c0_23, %c0_24], %31 {strides = array<i32>} : memref<8x128xbf16, #tpu.memory_space<vmem>>, vector<8x128xbf16>,
    return
  }
  func.func @transform_0(%arg0: i32) -> (i32, i32) {
    %c0_i32 = arith.constant 0 : i32
    %c0_i32_0 = arith.constant 0 : i32
    return %arg0, %c0_i32 : i32, i32
  }
  func.func @transform_1(%arg0: i32) -> (i32, i32) {
    %c0_i32 = arith.constant 0 : i32
    %c0_i32_0 = arith.constant 0 : i32
    %c0_i32_1 = arith.constant 0 : i32
    return %c0_i32, %c0_i32_0 : i32, i32
  }
  func.func @transform_2(%arg0: i32) -> (i32, i32) {
    %c0_i32 = arith.constant 0 : i32
    %c0_i32_0 = arith.constant 0 : i32
    %c0_i32_1 = arith.constant 0 : i32
    return %c0_i32, %c0_i32_0 : i32, i32
  }
  func.func @transform_3(%arg0: i32) -> (i32, i32) {
    %c0_i32 = arith.constant 0 : i32
    %c0_i32_0 = arith.constant 0 : i32
    %c0_i32_1 = arith.constant 0 : i32
    return %c0_i32, %c0_i32_0 : i32, i32
  }
  func.func @transform_4(%arg0: i32) -> (i32, i32) {
    %c0_i32 = arith.constant 0 : i32
    %c0_i32_0 = arith.constant 0 : i32
    %c0_i32_1 = arith.constant 0 : i32
    return %c0_i32, %c0_i32_0 : i32, i32
  }
  func.func @transform_5(%arg0: i32) -> (i32, i32) {
    %c0_i32 = arith.constant 0 : i32
    %c0_i32_0 = arith.constant 0 : i32
    %c0_i32_1 = arith.constant 0 : i32
    return %c0_i32, %c0_i32_0 : i32, i32
  }
  func.func @transform_6(%arg0: i32) -> (i32, i32) {
    %c0_i32 = arith.constant 0 : i32
    %c0_i32_0 = arith.constant 0 : i32
    %c0_i32_1 = arith.constant 0 : i32
    return %c0_i32, %c0_i32_0 : i32, i32
  }
  func.func @transform_7(%arg0: i32) -> (i32, i32) {
    %c0_i32 = arith.constant 0 : i32
    %c0_i32_0 = arith.constant 0 : i32
    %c0_i32_1 = arith.constant 0 : i32
    return %c0_i32, %c0_i32_0 : i32, i32
  }
  func.func @transform_8(%arg0: i32) -> (i32, i32) {
    %c0_i32 = arith.constant 0 : i32
    %c0_i32_0 = arith.constant 0 : i32
    %c0_i32_1 = arith.constant 0 : i32
    return %c0_i32, %c0_i32_0 : i32, i32
  }
  func.func @transform_9(%arg0: i32) -> (i32, i32) {
    %c0_i32 = arith.constant 0 : i32
    %c0_i32_0 = arith.constant 0 : i32
    return %arg0, %c0_i32 : i32, i32
  }
}

</mosaic_0001>

<llo_original>
// kernel: classifier_forward.1
$region0: #{classifier_forward.1}
  #allocation0 [shape = 'u32[]', space=smem, size = 0x4, offset = 0x4, fixed_abs, tag = 'smem constant byte address 0x4 - core index']
  #allocation1 [shape = 'u32[144,128]{1,0:T(1,128)}', space=vmem, size = 0x12000, scoped, tag = 'internal scratch']
  %s0 = inlined_call_operand.vmem [shape: f32[8,100], index: 0, kind: input, shape index: {}]
  %s1 = inlined_call_operand.hbm [shape: bf16[100,256], index: 1, kind: input, shape index: {}]
  %s2 = inlined_call_operand.vmem [shape: f32[1,256], index: 2, kind: input, shape index: {}]
  %s3 = inlined_call_operand.hbm [shape: bf16[256,128], index: 3, kind: input, shape index: {}]
  %s4 = inlined_call_operand.vmem [shape: f32[1,128], index: 4, kind: input, shape index: {}]
  %s5 = inlined_call_operand.vmem [shape: bf16[128,64], index: 5, kind: input, shape index: {}]
  %s6 = inlined_call_operand.vmem [shape: f32[1,64], index: 6, kind: input, shape index: {}]
  %s7 = inlined_call_operand.vmem [shape: bf16[64,128], index: 7, kind: input, shape index: {}]
  %s8 = inlined_call_operand.vmem [shape: f32[1,128], index: 8, kind: input, shape index: {}]
  %s9 = inlined_call_operand.vmem [shape: bf16[8,128], index: 9, kind: output, shape index: {}]
  %s10 = sld [smem:[#allocation0]]
  $region54: #{classifier_forward.1} parent=0
    _
  %s12 = ssub.s32 1, %s10
  %s13 = scalar_select 0, %s12, %s10
  $region1: #{classifier_forward.1} parent=0
    #allocation2 [shape = 'u8[53248]{0}', space=vmem, size = 0xd000, scoped, tag = 'input window, operand 1, single buffered']
    #allocation3 [shape = 's32[1]{0}', space=sflag, size = 0x4, scoped, tag = 'scoped memory for classifier_forward.1']
    #allocation4 [shape = 'u8[65536]{0}', space=vmem, size = 0x10000, scoped, tag = 'input window, operand 3, single buffered']
    #allocation5 [shape = 's32[1]{0}', space=sflag, size = 0x4, scoped, tag = 'scoped memory for classifier_forward.1']
    %14 = vsyncpa [#allocation3], 0
    %15 = vsyncpa [#allocation5], 0
    // Predicated region
    $region2: #{classifier_forward.1} parent=1 // pred_check
      _
    $region3: #{classifier_forward.1} parent=1 // pred_check_branch
      %17 = sbr.rel (0) target = $region5
    $region4: #{classifier_forward.1} parent=1 // pred_region
      _
    $region5: #{classifier_forward.1} parent=1 // pred_fallthru
      _
    // Predicated region
    $region6: #{classifier_forward.1} parent=1 // pred_check
      _
    $region7: #{classifier_forward.1} parent=1 // pred_check_branch
      %19 = sbr.rel (0) target = $region9
    $region8: #{classifier_forward.1} parent=1 // pred_region
      %s21 = ssub.s32 1664, 1664
      %22 = vsyncadd [#allocation3], %s21
      %s23 = sshll.u32 [#allocation2], 4
      %s24 = int_to_ptr.vmem [resolvable:$true] %s23
      %29 = dma.hbm_to_vmem [thread:$0]  %s1, 1664, %s24, [#allocation3], 128, 128, 8
    $region9: #{classifier_forward.1} parent=1 // pred_fallthru
      _
    // Predicated region
    $region10: #{classifier_forward.1} parent=1 // pred_check
      _
    $region11: #{classifier_forward.1} parent=1 // pred_check_branch
      %31 = sbr.rel (0) target = $region13
    $region12: #{classifier_forward.1} parent=1 // pred_region
      _
    $region13: #{classifier_forward.1} parent=1 // pred_fallthru
      _
    // Predicated region
    $region14: #{classifier_forward.1} parent=1 // pred_check
      _
    $region15: #{classifier_forward.1} parent=1 // pred_check_branch
      %33 = sbr.rel (0) target = $region17
    $region16: #{classifier_forward.1} parent=1 // pred_region
      %s35 = ssub.s32 2048, 2048
      %36 = vsyncadd [#allocation5], %s35
      %s37 = sshll.u32 [#allocation4], 4
      %s38 = int_to_ptr.vmem [resolvable:$true] %s37
      %43 = dma.hbm_to_vmem [thread:$0]  %s3, 2048, %s38, [#allocation5], 64, 64, 4
    $region17: #{classifier_forward.1} parent=1 // pred_fallthru
      _
    // Predicated region
    $region18: #{classifier_forward.1} parent=1 // pred_check
      _
    $region19: #{classifier_forward.1} parent=1 // pred_check_branch
      %45 = sbr.rel (0) target = $region21
    $region20: #{classifier_forward.1} parent=1 // pred_region
      _
    $region21: #{classifier_forward.1} parent=1 // pred_fallthru
      _
    // Predicated region
    $region22: #{classifier_forward.1} parent=1 // pred_check
      _
    $region23: #{classifier_forward.1} parent=1 // pred_check_branch
      %47 = sbr.rel (0) target = $region25
    $region24: #{classifier_forward.1} parent=1 // pred_region
      _
    $region25: #{classifier_forward.1} parent=1 // pred_fallthru
      _
    // Predicated region
    $region26: #{classifier_forward.1} parent=1 // pred_check
      _
    $region27: #{classifier_forward.1} parent=1 // pred_check_branch
      %49 = sbr.rel (0) target = $region29
    $region28: #{classifier_forward.1} parent=1 // pred_region
      _
    $region29: #{classifier_forward.1} parent=1 // pred_fallthru
      _
    // Predicated region
    $region30: #{classifier_forward.1} parent=1 // pred_check
      _
    $region31: #{classifier_forward.1} parent=1 // pred_check_branch
      %51 = sbr.rel (0) target = $region33
    $region32: #{classifier_forward.1} parent=1 // pred_region
      _
    $region33: #{classifier_forward.1} parent=1 // pred_fallthru
      _
    // Predicated region
    $region34: #{classifier_forward.1} parent=1 // pred_check
      _
    $region35: #{classifier_forward.1} parent=1 // pred_check_branch
      %53 = sbr.rel (0) target = $region37
    $region36: #{classifier_forward.1} parent=1 // pred_region
      _
    $region37: #{classifier_forward.1} parent=1 // pred_fallthru
      _
    // Predicated region
    $region38: #{classifier_forward.1} parent=1 // pred_check
      _
    $region39: #{classifier_forward.1} parent=1 // pred_check_branch
      %55 = sbr.rel (0) target = $region41
    $region40: #{classifier_forward.1} parent=1 // pred_region
      %56 = dma.done [#allocation3], 1664
    $region41: #{classifier_forward.1} parent=1 // pred_fallthru
      _
    // Predicated region
    $region42: #{classifier_forward.1} parent=1 // pred_check
      _
    $region43: #{classifier_forward.1} parent=1 // pred_check_branch
      %58 = sbr.rel (0) target = $region45
    $region44: #{classifier_forward.1} parent=1 // pred_region
      %59 = dma.done [#allocation5], 2048
    $region45: #{classifier_forward.1} parent=1 // pred_fallthru
      _
    %v61 = vld [vmem:[%s0] sm:$0xff]
    %v62 = vpack.c.bf16 %v61, %v61
    %v63 = vld [vmem:[#allocation2] sm:$0xff]
    %v64 = vld [vmem:[#allocation2 + $0x8] sm:$0xff]
    %v65 = vld [vmem:[#allocation2 + $0x10] sm:$0xff]
    %v66 = vld [vmem:[#allocation2 + $0x18] sm:$0xff]
    %v67 = vld [vmem:[#allocation2 + $0x20] sm:$0xff]
    %v68 = vld [vmem:[#allocation2 + $0x28] sm:$0xff]
    %v69 = vld [vmem:[#allocation2 + $0x30] sm:$0xff]
    %v70 = vld [vmem:[#allocation2 + $0x38] sm:$0xff]
    %v71 = vld [vmem:[#allocation2 + $0x40] sm:$0xff]
    %v72 = vld [vmem:[#allocation2 + $0x48] sm:$0xff]
    %v73 = vld [vmem:[#allocation2 + $0x50] sm:$0xff]
    %v74 = vld [vmem:[#allocation2 + $0x58] sm:$0xff]
    %v75 = vld [vmem:[#allocation2 + $0x60] sm:$0x33]
    %v76 = vld [vmem:[%s2] sm:$0x3]
    %v78 = vlaneseq
    %v79 = vshrl.u32 %v78, 7
    %v80 = vsub.s32 0, %v79
    %v81 = vrot.slane %v76, %v80
    %v82 = vlaneseq
    %v83 = vshrl.u32 %v82, 7
    %v84 = vsub.s32 1, %v83
    %v85 = vrot.slane %v76, %v84
    %v101 = vunpack.c.l.b16 %v63
    %v102 = vunpack.c.h.b16 %v63
    %v103 = vunpack.c.l.b16 %v64
    %v104 = vunpack.c.h.b16 %v64
    %v105 = vunpack.c.l.b16 %v65
    %v106 = vunpack.c.h.b16 %v65
    %v107 = vunpack.c.l.b16 %v66
    %v108 = vunpack.c.h.b16 %v66
    %v109 = vunpack.c.l.b16 %v67
    %v110 = vunpack.c.h.b16 %v67
    %v111 = vunpack.c.l.b16 %v68
    %v112 = vunpack.c.h.b16 %v68
    %v113 = vunpack.c.l.b16 %v69
    %v114 = vunpack.c.h.b16 %v69
    %v115 = vunpack.c.l.b16 %v70
    %v116 = vunpack.c.h.b16 %v70
    %v117 = vunpack.c.l.b16 %v71
    %v118 = vunpack.c.h.b16 %v71
    %v119 = vunpack.c.l.b16 %v72
    %v120 = vunpack.c.h.b16 %v72
    %v121 = vunpack.c.l.b16 %v73
    %v122 = vunpack.c.h.b16 %v73
    %v123 = vunpack.c.l.b16 %v74
    %v124 = vunpack.c.h.b16 %v74
    %v125 = vunpack.c.l.b16 %v75
    %v126 = vunpack.c.h.b16 %v75
    %v127 = vpack.c.b16 %v103, %v101
    %v128 = vpack.c.b16 %v104, %v102
    %v129 = vpack.c.b16 %v107, %v105
    %v130 = vpack.c.b16 %v108, %v106
    %v131 = vpack.c.b16 %v111, %v109
    %v132 = vpack.c.b16 %v112, %v110
    %v133 = vpack.c.b16 %v115, %v113
    %v134 = vpack.c.b16 %v116, %v114
    %v135 = vpack.c.b16 %v119, %v117
    %v136 = vpack.c.b16 %v120, %v118
    %v137 = vpack.c.b16 %v123, %v121
    %v138 = vpack.c.b16 %v124, %v122
    %v139 = vpack.c.b16 %v125, %v125
    %v140 = vpack.c.b16 %v126, %v126
    %vm153 = vcmask 818176
    %v155 = vsel %vm153, %v62, 0
    %vm157 = vcmask 1041408
    %v159 = vsel %vm157, %v139, 0
    %v162 = vsel %vm157, %v140, 0
    %164 = vmatprep.subr.bf16.mxu0 0
    %165 = vmatpush1.bf16.msra.mxu0 0
    %166 = vmatprep.subr.bf16.mxu0 %v162
    %167 = vmatpush1.bf16.msra.mxu0 %v159
    %168 = vmatprep.subr.bf16.mxu0 %v138
    %169 = vmatpush1.bf16.msra.mxu0 %v137
    %170 = vmatprep.subr.bf16.mxu0 %v136
    %171 = vmatpush1.bf16.msra.mxu0 %v135
    %172 = vmatprep.subr.bf16.mxu0 %v134
    %173 = vmatpush1.bf16.msra.mxu0 %v133
    %174 = vmatprep.subr.bf16.mxu0 %v132
    %175 = vmatpush1.bf16.msra.mxu0 %v131
    %176 = vmatprep.subr.bf16.mxu0 %v130
    %177 = vmatpush1.bf16.msra.mxu0 %v129
    %178 = vmatprep.subr.bf16.mxu0 %v128
    %179 = vmatpush1.bf16.msra.mxu0 %v127
    %180 = vmatprep.subr.bf16.mxu0 0
    %181 = vmatpush2.bf16.msra.mxu0 0
    %182 = vmatprep.subr.bf16.mxu0 0
    %183 = vmatpush2.bf16.msra.mxu0 0
    %184 = vmatprep.subr.bf16.mxu0 0
    %185 = vmatpush2.bf16.msra.mxu0 0
    %186 = vmatprep.subr.bf16.mxu0 0
    %187 = vmatpush2.bf16.msra.mxu0 0
    %188 = vmatprep.subr.bf16.mxu0 0
    %189 = vmatpush2.bf16.msra.mxu0 0
    %190 = vmatprep.subr.bf16.mxu0 0
    %191 = vmatpush2.bf16.msra.mxu0 0
    %192 = vmatprep.subr.bf16.mxu0 0
    %193 = vmatpush2.bf16.msra.mxu0 0
    %194 = vmatprep.subr.bf16.mxu0 0
    %195 = vmatpush2.bf16.msra.mxu0 0
    %196 = vmatprep.mubr.bf16.mxu0 0
    %197 = vmatmul.mubr.bf16.gmra.mxu0 %v155
    %v198 = vpop.f32.mrf.mxu0
    %v199 = vadd.f32 %v81, %v198
    %v200 = vpop.f32.mrf.mxu0
    %v201 = vadd.f32 %v85, %v200
    %v202 = vpop.f32.mrf.mxu0
    %v203 = vpop.f32.mrf.mxu0
    %204 = vdwg.mxu0
    %v205 = vmax.f32 %v199, 0.0
    %v206 = vmax.f32 %v201, 0.0
    %v207 = vpack.c.bf16 %v205, %v205
    %v208 = vpack.c.bf16 %v206, %v206
    %v209 = vld [vmem:[#allocation4] sm:$0xf]
    %v210 = vld [vmem:[#allocation4 + $0x4] sm:$0xf]
    %v211 = vld [vmem:[#allocation4 + $0x8] sm:$0xf]
    %v212 = vld [vmem:[#allocation4 + $0xc] sm:$0xf]
    %v213 = vld [vmem:[#allocation4 + $0x10] sm:$0xf]
    %v214 = vld [vmem:[#allocation4 + $0x14] sm:$0xf]
    %v215 = vld [vmem:[#allocation4 + $0x18] sm:$0xf]
    %v216 = vld [vmem:[#allocation4 + $0x1c] sm:$0xf]
    %v217 = vld [vmem:[#allocation4 + $0x20] sm:$0xf]
    %v218 = vld [vmem:[#allocation4 + $0x24] sm:$0xf]
    %v219 = vld [vmem:[#allocation4 + $0x28] sm:$0xf]
    %v220 = vld [vmem:[#allocation4 + $0x2c] sm:$0xf]
    %v221 = vld [vmem:[#allocation4 + $0x30] sm:$0xf]
    %v222 = vld [vmem:[#allocation4 + $0x34] sm:$0xf]
    %v223 = vld [vmem:[#allocation4 + $0x38] sm:$0xf]
    %v224 = vld [vmem:[#allocation4 + $0x3c] sm:$0xf]
    %v225 = vld [vmem:[#allocation4 + $0x40] sm:$0xf]
    %v226 = vld [vmem:[#allocation4 + $0x44] sm:$0xf]
    %v227 = vld [vmem:[#allocation4 + $0x48] sm:$0xf]
    %v228 = vld [vmem:[#allocation4 + $0x4c] sm:$0xf]
    %v229 = vld [vmem:[#allocation4 + $0x50] sm:$0xf]
    %v230 = vld [vmem:[#allocation4 + $0x54] sm:$0xf]
    %v231 = vld [vmem:[#allocation4 + $0x58] sm:$0xf]
    %v232 = vld [vmem:[#allocation4 + $0x5c] sm:$0xf]
    %v233 = vld [vmem:[#allocation4 + $0x60] sm:$0xf]
    %v234 = vld [vmem:[#allocation4 + $0x64] sm:$0xf]
    %v235 = vld [vmem:[#allocation4 + $0x68] sm:$0xf]
    %v236 = vld [vmem:[#allocation4 + $0x6c] sm:$0xf]
    %v237 = vld [vmem:[#allocation4 + $0x70] sm:$0xf]
    %v238 = vld [vmem:[#allocation4 + $0x74] sm:$0xf]
    %v239 = vld [vmem:[#allocation4 + $0x78] sm:$0xf]
    %v240 = vld [vmem:[#allocation4 + $0x7c] sm:$0xf]
    %v241 = vld [vmem:[%s4] sm:$0x1]
    %v243 = vlaneseq
    %v244 = vshrl.u32 %v243, 7
    %v245 = vsub.s32 0, %v244
    %v246 = vrot.slane %v241, %v245
    %v280 = vunpack.c.l.b16 %v209
    %v281 = vunpack.c.l.b16 %v210
    %v282 = vunpack.c.l.b16 %v211
    %v283 = vunpack.c.l.b16 %v212
    %v284 = vunpack.c.l.b16 %v213
    %v285 = vunpack.c.l.b16 %v214
    %v286 = vunpack.c.l.b16 %v215
    %v287 = vunpack.c.l.b16 %v216
    %v288 = vunpack.c.l.b16 %v217
    %v289 = vunpack.c.l.b16 %v218
    %v290 = vunpack.c.l.b16 %v219
    %v291 = vunpack.c.l.b16 %v220
    %v292 = vunpack.c.l.b16 %v221
    %v293 = vunpack.c.l.b16 %v222
    %v294 = vunpack.c.l.b16 %v223
    %v295 = vunpack.c.l.b16 %v224
    %v296 = vunpack.c.l.b16 %v225
    %v297 = vunpack.c.l.b16 %v226
    %v298 = vunpack.c.l.b16 %v227
    %v299 = vunpack.c.l.b16 %v228
    %v300 = vunpack.c.l.b16 %v229
    %v301 = vunpack.c.l.b16 %v230
    %v302 = vunpack.c.l.b16 %v231
    %v303 = vunpack.c.l.b16 %v232
    %v304 = vunpack.c.l.b16 %v233
    %v305 = vunpack.c.l.b16 %v234
    %v306 = vunpack.c.l.b16 %v235
    %v307 = vunpack.c.l.b16 %v236
    %v308 = vunpack.c.l.b16 %v237
    %v309 = vunpack.c.l.b16 %v238
    %v310 = vunpack.c.l.b16 %v239
    %v311 = vunpack.c.l.b16 %v240
    %v312 = vpack.c.b16 %v281, %v280
    %v313 = vpack.c.b16 %v283, %v282
    %v314 = vpack.c.b16 %v285, %v284
    %v315 = vpack.c.b16 %v287, %v286
    %v316 = vpack.c.b16 %v289, %v288
    %v317 = vpack.c.b16 %v291, %v290
    %v318 = vpack.c.b16 %v293, %v292
    %v319 = vpack.c.b16 %v295, %v294
    %v320 = vpack.c.b16 %v297, %v296
    %v321 = vpack.c.b16 %v299, %v298
    %v322 = vpack.c.b16 %v301, %v300
    %v323 = vpack.c.b16 %v303, %v302
    %v324 = vpack.c.b16 %v305, %v304
    %v325 = vpack.c.b16 %v307, %v306
    %v326 = vpack.c.b16 %v309, %v308
    %v327 = vpack.c.b16 %v311, %v310
    %344 = vmatprep.subr.bf16.mxu0 0
    %345 = vmatpush1.bf16.msra.mxu0 %v319
    %346 = vmatprep.subr.bf16.mxu0 0
    %347 = vmatpush1.bf16.msra.mxu0 %v318
    %348 = vmatprep.subr.bf16.mxu0 0
    %349 = vmatpush1.bf16.msra.mxu0 %v317
    %350 = vmatprep.subr.bf16.mxu0 0
    %351 = vmatpush1.bf16.msra.mxu0 %v316
    %352 = vmatprep.subr.bf16.mxu0 0
    %353 = vmatpush1.bf16.msra.mxu0 %v315
    %354 = vmatprep.subr.bf16.mxu0 0
    %355 = vmatpush1.bf16.msra.mxu0 %v314
    %356 = vmatprep.subr.bf16.mxu0 0
    %357 = vmatpush1.bf16.msra.mxu0 %v313
    %358 = vmatprep.subr.bf16.mxu0 0
    %359 = vmatpush1.bf16.msra.mxu0 %v312
    %360 = vmatprep.subr.bf16.mxu0 0
    %361 = vmatpush2.bf16.msra.mxu0 %v327
    %362 = vmatprep.subr.bf16.mxu0 0
    %363 = vmatpush2.bf16.msra.mxu0 %v326
    %364 = vmatprep.subr.bf16.mxu0 0
    %365 = vmatpush2.bf16.msra.mxu0 %v325
    %366 = vmatprep.subr.bf16.mxu0 0
    %367 = vmatpush2.bf16.msra.mxu0 %v324
    %368 = vmatprep.subr.bf16.mxu0 0
    %369 = vmatpush2.bf16.msra.mxu0 %v323
    %370 = vmatprep.subr.bf16.mxu0 0
    %371 = vmatpush2.bf16.msra.mxu0 %v322
    %372 = vmatprep.subr.bf16.mxu0 0
    %373 = vmatpush2.bf16.msra.mxu0 %v321
    %374 = vmatprep.subr.bf16.mxu0 0
    %375 = vmatpush2.bf16.msra.mxu0 %v320
    %376 = vmatprep.mubr.bf16.mxu0 %v208
    %377 = vmatmul.mubr.bf16.gmra.mxu0 %v207
    %v378 = vpop.f32.mrf.mxu0
    %v379 = vadd.f32 %v246, %v378
    %v380 = vpop.f32.mrf.mxu0
    %v381 = vpop.f32.mrf.mxu0
    %v382 = vpop.f32.mrf.mxu0
    %383 = vdwg.mxu0
    %v384 = vmax.f32 %v379, 0.0
    %v385 = vpack.c.bf16 %v384, %v384
    %v386 = vld [vmem:[%s5] sm:$0xf]
    %v387 = vld [vmem:[%s5 + $0x4] sm:$0xf]
    %v388 = vld [vmem:[%s5 + $0x8] sm:$0xf]
    %v389 = vld [vmem:[%s5 + $0xc] sm:$0xf]
    %v390 = vld [vmem:[%s5 + $0x10] sm:$0xf]
    %v391 = vld [vmem:[%s5 + $0x14] sm:$0xf]
    %v392 = vld [vmem:[%s5 + $0x18] sm:$0xf]
    %v393 = vld [vmem:[%s5 + $0x1c] sm:$0xf]
    %v394 = vld [vmem:[%s5 + $0x20] sm:$0xf]
    %v395 = vld [vmem:[%s5 + $0x24] sm:$0xf]
    %v396 = vld [vmem:[%s5 + $0x28] sm:$0xf]
    %v397 = vld [vmem:[%s5 + $0x2c] sm:$0xf]
    %v398 = vld [vmem:[%s5 + $0x30] sm:$0xf]
    %v399 = vld [vmem:[%s5 + $0x34] sm:$0xf]
    %v400 = vld [vmem:[%s5 + $0x38] sm:$0xf]
    %v401 = vld [vmem:[%s5 + $0x3c] sm:$0xf]
    %v402 = vld [vmem:[%s6] sm:$0x1]
    %v404 = vlaneseq
    %v405 = vshrl.u32 %v404, 7
    %v406 = vsub.s32 0, %v405
    %v407 = vrot.slane %v402, %v406
    %v425 = vunpack.c.l.b16 %v386
    %v426 = vunpack.c.l.b16 %v387
    %v427 = vunpack.c.l.b16 %v388
    %v428 = vunpack.c.l.b16 %v389
    %v429 = vunpack.c.l.b16 %v390
    %v430 = vunpack.c.l.b16 %v391
    %v431 = vunpack.c.l.b16 %v392
    %v432 = vunpack.c.l.b16 %v393
    %v433 = vunpack.c.l.b16 %v394
    %v434 = vunpack.c.l.b16 %v395
    %v435 = vunpack.c.l.b16 %v396
    %v436 = vunpack.c.l.b16 %v397
    %v437 = vunpack.c.l.b16 %v398
    %v438 = vunpack.c.l.b16 %v399
    %v439 = vunpack.c.l.b16 %v400
    %v440 = vunpack.c.l.b16 %v401
    %v441 = vpack.c.b16 %v426, %v425
    %v442 = vpack.c.b16 %v428, %v427
    %v443 = vpack.c.b16 %v430, %v429
    %v444 = vpack.c.b16 %v432, %v431
    %v445 = vpack.c.b16 %v434, %v433
    %v446 = vpack.c.b16 %v436, %v435
    %v447 = vpack.c.b16 %v438, %v437
    %v448 = vpack.c.b16 %v440, %v439
    %457 = vmatprep.subr.bf16.mxu0 0
    %458 = vmatpush1.bf16.msra.mxu0 %v448
    %459 = vmatprep.subr.bf16.mxu0 0
    %460 = vmatpush1.bf16.msra.mxu0 %v447
    %461 = vmatprep.subr.bf16.mxu0 0
    %462 = vmatpush1.bf16.msra.mxu0 %v446
    %463 = vmatprep.subr.bf16.mxu0 0
    %464 = vmatpush1.bf16.msra.mxu0 %v445
    %465 = vmatprep.subr.bf16.mxu0 0
    %466 = vmatpush1.bf16.msra.mxu0 %v444
    %467 = vmatprep.subr.bf16.mxu0 0
    %468 = vmatpush1.bf16.msra.mxu0 %v443
    %469 = vmatprep.subr.bf16.mxu0 0
    %470 = vmatpush1.bf16.msra.mxu0 %v442
    %471 = vmatprep.subr.bf16.mxu0 0
    %472 = vmatpush1.bf16.msra.mxu0 %v441
    %473 = vmatprep.subr.bf16.mxu0 0
    %474 = vmatpush2.bf16.msra.mxu0 0
    %475 = vmatprep.subr.bf16.mxu0 0
    %476 = vmatpush2.bf16.msra.mxu0 0
    %477 = vmatprep.subr.bf16.mxu0 0
    %478 = vmatpush2.bf16.msra.mxu0 0
    %479 = vmatprep.subr.bf16.mxu0 0
    %480 = vmatpush2.bf16.msra.mxu0 0
    %481 = vmatprep.subr.bf16.mxu0 0
    %482 = vmatpush2.bf16.msra.mxu0 0
    %483 = vmatprep.subr.bf16.mxu0 0
    %484 = vmatpush2.bf16.msra.mxu0 0
    %485 = vmatprep.subr.bf16.mxu0 0
    %486 = vmatpush2.bf16.msra.mxu0 0
    %487 = vmatprep.subr.bf16.mxu0 0
    %488 = vmatpush2.bf16.msra.mxu0 0
    %489 = vmatprep.mubr.bf16.mxu0 0
    %490 = vmatmul.mubr.bf16.gmra.mxu0 %v385
    %v491 = vpop.f32.mrf.mxu0
    %v492 = vadd.f32 %v407, %v491
    %v493 = vpop.f32.mrf.mxu0
    %v494 = vpop.f32.mrf.mxu0
    %v495 = vpop.f32.mrf.mxu0
    %496 = vdwg.mxu0
    %v497 = vmax.f32 %v492, 0.0
    %v498 = vpack.c.bf16 %v497, %v497
    %v499 = vld [vmem:[%s7] sm:$0xf]
    %v500 = vld [vmem:[%s7 + $0x4] sm:$0xf]
    %v501 = vld [vmem:[%s7 + $0x8] sm:$0xf]
    %v502 = vld [vmem:[%s7 + $0xc] sm:$0xf]
    %v503 = vld [vmem:[%s7 + $0x10] sm:$0xf]
    %v504 = vld [vmem:[%s7 + $0x14] sm:$0xf]
    %v505 = vld [vmem:[%s7 + $0x18] sm:$0xf]
    %v506 = vld [vmem:[%s7 + $0x1c] sm:$0xf]
    %v507 = vld [vmem:[%s8] sm:$0x1]
    %v509 = vlaneseq
    %v510 = vshrl.u32 %v509, 7
    %v511 = vsub.s32 0, %v510
    %v512 = vrot.slane %v507, %v511
    %v522 = vunpack.c.l.b16 %v499
    %v523 = vunpack.c.l.b16 %v500
    %v524 = vunpack.c.l.b16 %v501
    %v525 = vunpack.c.l.b16 %v502
    %v526 = vunpack.c.l.b16 %v503
    %v527 = vunpack.c.l.b16 %v504
    %v528 = vunpack.c.l.b16 %v505
    %v529 = vunpack.c.l.b16 %v506
    %v530 = vpack.c.b16 %v523, %v522
    %v531 = vpack.c.b16 %v525, %v524
    %v532 = vpack.c.b16 %v527, %v526
    %v533 = vpack.c.b16 %v529, %v528
    %vm538 = vcmask 523264
    %v540 = vsel %vm538, %v498, 0
    %542 = vmatprep.subr.bf16.mxu0 0
    %543 = vmatpush1.bf16.msra.mxu0 0
    %544 = vmatprep.subr.bf16.mxu0 0
    %545 = vmatpush1.bf16.msra.mxu0 0
    %546 = vmatprep.subr.bf16.mxu0 0
    %547 = vmatpush1.bf16.msra.mxu0 0
    %548 = vmatprep.subr.bf16.mxu0 0
    %549 = vmatpush1.bf16.msra.mxu0 0
    %550 = vmatprep.subr.bf16.mxu0 0
    %551 = vmatpush1.bf16.msra.mxu0 %v533
    %552 = vmatprep.subr.bf16.mxu0 0
    %553 = vmatpush1.bf16.msra.mxu0 %v532
    %554 = vmatprep.subr.bf16.mxu0 0
    %555 = vmatpush1.bf16.msra.mxu0 %v531
    %556 = vmatprep.subr.bf16.mxu0 0
    %557 = vmatpush1.bf16.msra.mxu0 %v530
    %558 = vmatprep.subr.bf16.mxu0 0
    %559 = vmatpush2.bf16.msra.mxu0 0
    %560 = vmatprep.subr.bf16.mxu0 0
    %561 = vmatpush2.bf16.msra.mxu0 0
    %562 = vmatprep.subr.bf16.mxu0 0
    %563 = vmatpush2.bf16.msra.mxu0 0
    %564 = vmatprep.subr.bf16.mxu0 0
    %565 = vmatpush2.bf16.msra.mxu0 0
    %566 = vmatprep.subr.bf16.mxu0 0
    %567 = vmatpush2.bf16.msra.mxu0 0
    %568 = vmatprep.subr.bf16.mxu0 0
    %569 = vmatpush2.bf16.msra.mxu0 0
    %570 = vmatprep.subr.bf16.mxu0 0
    %571 = vmatpush2.bf16.msra.mxu0 0
    %572 = vmatprep.subr.bf16.mxu0 0
    %573 = vmatpush2.bf16.msra.mxu0 0
    %574 = vmatprep.mubr.bf16.mxu0 0
    %575 = vmatmul.mubr.bf16.gmra.mxu0 %v540
    %v576 = vpop.f32.mrf.mxu0
    %v577 = vadd.f32 %v512, %v576
    %v578 = vpop.f32.mrf.mxu0
    %v579 = vpop.f32.mrf.mxu0
    %v580 = vpop.f32.mrf.mxu0
    %581 = vdwg.mxu0
    %v582 = vpack.c.bf16 %v577, %v577
    %583 = vst [vmem:[%s9] sm:$0xf] %v582
    // Predicated region
    $region46: #{classifier_forward.1} parent=1 // pred_check
      _
    $region47: #{classifier_forward.1} parent=1 // pred_check_branch
      %585 = sbr.rel (0) target = $region49
    $region48: #{classifier_forward.1} parent=1 // pred_region
      _
    $region49: #{classifier_forward.1} parent=1 // pred_fallthru
      _
    // Predicated region
    $region50: #{classifier_forward.1} parent=1 // pred_check
      _
    $region51: #{classifier_forward.1} parent=1 // pred_check_branch
      %587 = sbr.rel (0) target = $region53
    $region52: #{classifier_forward.1} parent=1 // pred_region
      _
    $region53: #{classifier_forward.1} parent=1 // pred_fallthru
      _
    %588 = vsyncpa [#allocation3], 1
    %589 = vsyncpa [#allocation5], 1

</llo_original>
